<compile_context>
chip_gen: v5e
topology: v5e:2x2
jax: 0.10.0
libtpu: 0.0.40
codegen_flags: <defaults>
</compile_context>

<pallas_src>
import jax
import jax.numpy as jnp
from jax.experimental import pallas as pl
from jax.experimental.pallas import tpu as pltpu


def _linear_sigmoid_kernel(x_ref, w_ref, b_ref, o_ref):
    # x_ref: (TM, In)   bf16 batch tile (double-buffered per grid step)
    # w_ref: (In, OutP) bf16 resident weight (single-buffered)
    # b_ref: (1, OutP)  f32 resident bias
    acc = jnp.dot(x_ref[...], w_ref[...], preferred_element_type=jnp.float32)
    acc = acc + b_ref[...]
    # sigmoid(z) = 1 / (1 + exp(-z)): exp goes to the EUP slot, approximate
    # reciprocal avoids a full-precision VALU divide.
    o_ref[...] = pl.reciprocal(1.0 + jnp.exp(-acc), approx=True).astype(o_ref.dtype)


def _round_up(x, m):
    return ((x + m - 1) // m) * m


def linear_regression_forward(x, w_t, b, *, compute_dtype=jnp.bfloat16):
    """y = sigmoid(x @ w_t + b).

    x   : [B, In]   float32
    w_t : [In, Out] float32  (torch weight already transposed)
    b   : [Out]     float32
    """
    B, In = x.shape
    In_w, Out = w_t.shape
    assert In_w == In and b.shape == (Out,)

    # Lane-dense output: pad Out to a multiple of 128 lanes (full-width vst).
    OutP = _round_up(Out, 128)
    cbytes = jnp.dtype(compute_dtype).itemsize

    # --- VMEM budget & batch-tile selection --------------------------------
    try:
        vmem_cap = int(pltpu.get_tpu_info().vmem_capacity_bytes)
    except Exception:
        vmem_cap = 64 * 1024 * 1024  # conservative: v7x per-TC physical VMEM
    if vmem_cap <= 0:
        vmem_cap = 64 * 1024 * 1024
    vmem_budget = (vmem_cap * 3) // 4  # headroom for compiler scratch

    resident_bytes = In * OutP * cbytes + OutP * 4  # weight + bias, 1 buffer
    # TODO(synk): K-tile (see header) instead of spilling when
    #             resident_bytes > vmem_budget.
    tile_budget = max(vmem_budget - resident_bytes, 1 << 20)
    row_bytes = 2 * (In + OutP) * cbytes            # x + out, double-buffered
    tm = tile_budget // row_bytes
    tm = max(8, (tm // 16) * 16)     # multiple of 16 sublanes (bf16 packing)
    tm = min(tm, 1024)               # no measurable roofline gain past ~1K rows
    tm = min(tm, _round_up(B, 8))    # never larger than the (8-rounded) batch
    if B > 8 and pl.cdiv(B, tm) < 2:
        # >=2 grid steps so v7x's two TensorCores both get work.
        tm = max(8, _round_up(pl.cdiv(B, 2), 8))
    grid = (pl.cdiv(B, tm),)

    tile_bytes = 2 * tm * (In + OutP) * cbytes
    vmem_limit = min(vmem_cap, max(16 * 1024 * 1024,
                                   int((resident_bytes + tile_bytes) * 1.5)))

    # --- Cast / pad operands ------------------------------------------------
    x_c = x.astype(compute_dtype)
    w_c = w_t.astype(compute_dtype)
    w_p = w_c if OutP == Out else jnp.pad(w_c, ((0, 0), (0, OutP - Out)))
    b_p = b if OutP == Out else jnp.pad(b, (0, OutP - Out))
    b_p = b_p.astype(jnp.float32).reshape(1, OutP)

    cost = pl.CostEstimate(
        flops=2 * B * In * Out,
        transcendentals=B * Out,
        bytes_accessed=cbytes * (B * In + In * OutP + B * OutP) + 4 * OutP,
    )

    def _call(resident_single_buffered):
        resident_mode = (
            dict(pipeline_mode=pl.Buffered(1)) if resident_single_buffered else {}
        )
        return pl.pallas_call(
            _linear_sigmoid_kernel,
            out_shape=jax.ShapeDtypeStruct((B, OutP), compute_dtype),
            grid_spec=pl.GridSpec(
                grid=grid,
                in_specs=[
                    # x: tiled along batch -> auto double-buffered DMA.
                    pl.BlockSpec((tm, In), lambda i: (i, 0)),
                    # weight: same block every step -> VMEM-resident.
                    pl.BlockSpec((In, OutP), lambda i: (0, 0), **resident_mode),
                    # bias: resident, never re-DMA'd.
                    pl.BlockSpec((1, OutP), lambda i: (0, 0), **resident_mode),
                ],
                out_specs=pl.BlockSpec((tm, OutP), lambda i: (i, 0)),
            ),
            compiler_params=pltpu.CompilerParams(
                dimension_semantics=("parallel",),  # megacore-shardable batch
                vmem_limit_bytes=vmem_limit,
            ),
            cost_estimate=cost,
        )(x_c, w_p, b_p)

    try:
        out_p = _call(True)
    except Exception:
        # Older JAX may reject Buffered(1); keep default double-buffering.
        out_p = _call(False)

    # Slice away output-lane padding, cast back to the caller's dtype.
    return out_p[:, :Out].astype(x.dtype)


if __name__ == "__main__":
    key = jax.random.PRNGKey(0)
    k_x, k_w, k_b = jax.random.split(key, 3)

    batch = 8
    input_size = 32
    output_size = 16

    x = jax.random.normal(k_x, (batch, input_size), dtype=jnp.float32)

    # Deterministic parameter init mimicking nn.Linear default:
    # U(-1/sqrt(in), 1/sqrt(in)) for both weight and bias.
    bound = 1.0 / (input_size ** 0.5)
    w = jax.random.uniform(k_w, (output_size, input_size),
                           minval=-bound, maxval=bound, dtype=jnp.float32)
    b = jax.random.uniform(k_b, (output_size,),
                           minval=-bound, maxval=bound, dtype=jnp.float32)

    w_t = w.T  # [input_size, output_size]

    out = linear_regression_forward(x, w_t, b)
    out = jax.block_until_ready(out)

    # Reference check in plain JAX (f32). bf16 streaming + approx reciprocal
    # in the kernel -> ~1e-3-level error, so tolerance is loosened vs. f32.
    ref = jax.nn.sigmoid(x @ w.T + b)
    assert out.shape == (batch, output_size)
    assert jnp.allclose(out, ref, atol=2e-2, rtol=2e-2), (
        float(jnp.max(jnp.abs(out - ref))))

    print("KERNEL_OK")
</pallas_src>

<mosaic_0001>
module attributes {stable_mosaic.version = 11 : i64} {
  func.func @_linear_sigmoid_kernel(%arg0: i32, %arg1: memref<8x32xbf16, #tpu.memory_space<vmem>>, %arg2: memref<32x128xbf16, #tpu.memory_space<vmem>>, %arg3: memref<1x128xf32, #tpu.memory_space<vmem>>, %arg4: memref<8x128xbf16, #tpu.memory_space<vmem>>) attributes {dimension_semantics = [#tpu.dimension_semantics<parallel>], iteration_bounds = array<i64: 1>, scalar_prefetch = 0 : i64, scratch_operands = 0 : i64, tpu.core_type = #tpu.core_type<tc>, window_params = [{transform_indices = @transform_0, window_bounds = array<i64: 8, 32>}, {pipeline_mode = #tpu.pipeline_mode<synchronous>, transform_indices = @transform_1, window_bounds = array<i64: 32, 128>}, {pipeline_mode = #tpu.pipeline_mode<synchronous>, transform_indices = @transform_2, window_bounds = array<i64: 1, 128>}, {transform_indices = @transform_3, window_bounds = array<i64: 8, 128>}]} {
    %c0 = arith.constant 0 : index
    %c0_0 = arith.constant 0 : index
    %0 = vector.load %arg1[%c0, %c0_0] : memref<8x32xbf16, #tpu.memory_space<vmem>>, vector<8x32xbf16>
    %c0_1 = arith.constant 0 : index
    %c0_2 = arith.constant 0 : index
    %1 = vector.load %arg2[%c0_1, %c0_2] : memref<32x128xbf16, #tpu.memory_space<vmem>>, vector<32x128xbf16>
    %cst = arith.constant dense<0.000000e+00> : vector<8x128xf32>
    %2 = tpu.matmul %0, %1, %cst {dimension_numbers = #tpu.dot_dimension_numbers<[1], [0], [0], [1], [0, 0, 1, 1], [], []>} : vector<8x32xbf16>, vector<32x128xbf16>, vector<8x128xf32> -> vector<8x128xf32>
    %c0_3 = arith.constant 0 : index
    %c0_4 = arith.constant 0 : index
    %3 = vector.load %arg3[%c0_3, %c0_4] : memref<1x128xf32, #tpu.memory_space<vmem>>, vector<1x128xf32>
    %4 = vector.broadcast %3 : vector<1x128xf32> to vector<8x128xf32>
    %5 = arith.addf %2, %4 : vector<8x128xf32>
    %cst_5 = arith.constant 0.000000e+00 : f32
    %6 = vector.broadcast %cst_5 : f32 to vector<8x128xf32>
    %7 = arith.subf %6, %5 : vector<8x128xf32>
    %8 = math.exp %7 : vector<8x128xf32>
    %cst_6 = arith.constant 1.000000e+00 : f32
    %9 = vector.broadcast %cst_6 : f32 to vector<8x128xf32>
    %10 = arith.addf %9, %8 : vector<8x128xf32>
    %11 = tpu.reciprocal %10 {approx = true} : vector<8x128xf32> -> vector<8x128xf32>
    %12 = arith.truncf %11 : vector<8x128xf32> to vector<8x128xbf16>
    %c0_7 = arith.constant 0 : index
    %c0_8 = arith.constant 0 : index
    %13 = vector.load %arg4[%c0_7, %c0_8] : memref<8x128xbf16, #tpu.memory_space<vmem>>, vector<8x128xbf16>
    tpu.vector_store %arg4[%c0_7, %c0_8], %12 {strides = array<i32>} : memref<8x128xbf16, #tpu.memory_space<vmem>>, vector<8x128xbf16>,
    return
  }
  func.func @transform_0(%arg0: i32) -> (i32, i32) {
    %c0_i32 = arith.constant 0 : i32
    %c0_i32_0 = arith.constant 0 : i32
    return %arg0, %c0_i32 : i32, i32
  }
  func.func @transform_1(%arg0: i32) -> (i32, i32) {
    %c0_i32 = arith.constant 0 : i32
    %c0_i32_0 = arith.constant 0 : i32
    %c0_i32_1 = arith.constant 0 : i32
    return %c0_i32, %c0_i32_0 : i32, i32
  }
  func.func @transform_2(%arg0: i32) -> (i32, i32) {
    %c0_i32 = arith.constant 0 : i32
    %c0_i32_0 = arith.constant 0 : i32
    %c0_i32_1 = arith.constant 0 : i32
    return %c0_i32, %c0_i32_0 : i32, i32
  }
  func.func @transform_3(%arg0: i32) -> (i32, i32) {
    %c0_i32 = arith.constant 0 : i32
    %c0_i32_0 = arith.constant 0 : i32
    return %arg0, %c0_i32 : i32, i32
  }
}

module attributes {stable_mosaic.version = 11 : i64} {
  func.func @_linear_sigmoid_kernel(%arg0: i32, %arg1: memref<8x32xbf16, #tpu.memory_space<vmem>>, %arg2: memref<32x128xbf16, #tpu.memory_space<vmem>>, %arg3: memref<1x128xf32, #tpu.memory_space<vmem>>, %arg4: memref<8x128xbf16, #tpu.memory_space<vmem>>) attributes {dimension_semantics = [#tpu.dimension_semantics<parallel>], iteration_bounds = array<i64: 1>, scalar_prefetch = 0 : i64, scratch_operands = 0 : i64, tpu.core_type = #tpu.core_type<tc>, window_params = [{transform_indices = @transform_0, window_bounds = array<i64: 8, 32>}, {pipeline_mode = #tpu.pipeline_mode<synchronous>, transform_indices = @transform_1, window_bounds = array<i64: 32, 128>}, {pipeline_mode = #tpu.pipeline_mode<synchronous>, transform_indices = @transform_2, window_bounds = array<i64: 1, 128>}, {transform_indices = @transform_3, window_bounds = array<i64: 8, 128>}]} {
    %c0 = arith.constant 0 : index
    %c0_0 = arith.constant 0 : index
    %0 = vector.load %arg1[%c0, %c0_0] : memref<8x32xbf16, #tpu.memory_space<vmem>>, vector<8x32xbf16>
    %c0_1 = arith.constant 0 : index
    %c0_2 = arith.constant 0 : index
    %1 = vector.load %arg2[%c0_1, %c0_2] : memref<32x128xbf16, #tpu.memory_space<vmem>>, vector<32x128xbf16>
    %cst = arith.constant dense<0.000000e+00> : vector<8x128xf32>
    %2 = tpu.matmul %0, %1, %cst {dimension_numbers = #tpu.dot_dimension_numbers<[1], [0], [0], [1], [0, 0, 1, 1], [], []>} : vector<8x32xbf16>, vector<32x128xbf16>, vector<8x128xf32> -> vector<8x128xf32>
    %c0_3 = arith.constant 0 : index
    %c0_4 = arith.constant 0 : index
    %3 = vector.load %arg3[%c0_3, %c0_4] : memref<1x128xf32, #tpu.memory_space<vmem>>, vector<1x128xf32>
    %4 = vector.broadcast %3 : vector<1x128xf32> to vector<8x128xf32>
    %5 = arith.addf %2, %4 : vector<8x128xf32>
    %cst_5 = arith.constant 0.000000e+00 : f32
    %6 = vector.broadcast %cst_5 : f32 to vector<8x128xf32>
    %7 = arith.subf %6, %5 : vector<8x128xf32>
    %8 = math.exp %7 : vector<8x128xf32>
    %cst_6 = arith.constant 1.000000e+00 : f32
    %9 = vector.broadcast %cst_6 : f32 to vector<8x128xf32>
    %10 = arith.addf %9, %8 : vector<8x128xf32>
    %11 = tpu.reciprocal %10 {approx = true} : vector<8x128xf32> -> vector<8x128xf32>
    %12 = arith.truncf %11 : vector<8x128xf32> to vector<8x128xbf16>
    %c0_7 = arith.constant 0 : index
    %c0_8 = arith.constant 0 : index
    %13 = vector.load %arg4[%c0_7, %c0_8] : memref<8x128xbf16, #tpu.memory_space<vmem>>, vector<8x128xbf16>
    tpu.vector_store %arg4[%c0_7, %c0_8], %12 {strides = array<i32>} : memref<8x128xbf16, #tpu.memory_space<vmem>>, vector<8x128xbf16>,
    return
  }
  func.func @transform_0(%arg0: i32) -> (i32, i32) {
    %c0_i32 = arith.constant 0 : i32
    %c0_i32_0 = arith.constant 0 : i32
    return %arg0, %c0_i32 : i32, i32
  }
  func.func @transform_1(%arg0: i32) -> (i32, i32) {
    %c0_i32 = arith.constant 0 : i32
    %c0_i32_0 = arith.constant 0 : i32
    %c0_i32_1 = arith.constant 0 : i32
    return %c0_i32, %c0_i32_0 : i32, i32
  }
  func.func @transform_2(%arg0: i32) -> (i32, i32) {
    %c0_i32 = arith.constant 0 : i32
    %c0_i32_0 = arith.constant 0 : i32
    %c0_i32_1 = arith.constant 0 : i32
    return %c0_i32, %c0_i32_0 : i32, i32
  }
  func.func @transform_3(%arg0: i32) -> (i32, i32) {
    %c0_i32 = arith.constant 0 : i32
    %c0_i32_0 = arith.constant 0 : i32
    return %arg0, %c0_i32 : i32, i32
  }
}

</mosaic_0001>

<llo_original>
// kernel: tpu_custom_call.1
$region0: #{tpu_custom_call.1}
  #allocation0 [shape = 'u32[]', space=smem, size = 0x4, offset = 0x4, fixed_abs, tag = 'smem constant byte address 0x4 - core index']
  #allocation1 [shape = 'u32[72,128]{1,0:T(1,128)}', space=vmem, size = 0x9000, scoped, tag = 'internal scratch']
  %s0 = inlined_call_operand.hbm [shape: bf16[8,32], index: 0, kind: input, shape index: {}]
  %s1 = inlined_call_operand.hbm [shape: bf16[32,128], index: 1, kind: input, shape index: {}]
  %s2 = inlined_call_operand.vmem [shape: f32[1,128], index: 2, kind: input, shape index: {}]
  %s3 = inlined_call_operand.hbm [shape: bf16[8,128], index: 3, kind: output, shape index: {}]
  %s4 = sld [smem:[#allocation0]]
  $region30: #{tpu_custom_call.1} parent=0
    _
  %s6 = ssub.s32 1, %s4
  %s7 = scalar_select 0, %s6, %s4
  $region1: #{tpu_custom_call.1} parent=0
    #allocation2 [shape = 'u8[2048]{0}', space=vmem, size = 0x800, scoped, tag = 'input window, operand 0, single buffered']
    #allocation3 [shape = 's32[1]{0}', space=sflag, size = 0x4, scoped, tag = 'scoped memory for tpu_custom_call.1']
    #allocation4 [shape = 's32[1]{0}', space=sflag, size = 0x4, scoped, tag = 'scoped memory for tpu_custom_call.1']
    #allocation5 [shape = 'u8[8192]{0}', space=vmem, size = 0x2000, scoped, tag = 'input window, operand 1, single buffered']
    #allocation6 [shape = 's32[1]{0}', space=sflag, size = 0x4, scoped, tag = 'scoped memory for tpu_custom_call.1']
    #allocation7 [shape = 'u8[2048]{0}', space=vmem, size = 0x800, scoped, tag = 'output window, operand 0, single buffered']
    %8 = vsyncpa [#allocation3], 0
    %9 = vsyncpa [#allocation6], 0
    %10 = vsyncpa [#allocation4], 0
    // Predicated region
    $region2: #{tpu_custom_call.1} parent=1 // pred_check
      _
    $region3: #{tpu_custom_call.1} parent=1 // pred_check_branch
      %12 = sbr.rel (0) target = $region5
    $region4: #{tpu_custom_call.1} parent=1 // pred_region
      %14 = vsyncadd [#allocation3], 0
      %s16 = sshll.u32 %s0, 4
      %s17 = int_to_ptr.hbm [resolvable:$true] %s16
      %s18 = sshll.u32 [#allocation2], 4
      %s19 = int_to_ptr.vmem [resolvable:$true] %s18
      %21 = dma.hbm_to_vmem [thread:$0]  %s17, 64, %s19, [#allocation3]
    $region5: #{tpu_custom_call.1} parent=1 // pred_fallthru
      _
    // Predicated region
    $region6: #{tpu_custom_call.1} parent=1 // pred_check
      _
    $region7: #{tpu_custom_call.1} parent=1 // pred_check_branch
      %23 = sbr.rel (0) target = $region9
    $region8: #{tpu_custom_call.1} parent=1 // pred_region
      %25 = vsyncadd [#allocation6], 0
      %s26 = sshll.u32 %s1, 4
      %s27 = int_to_ptr.hbm [resolvable:$true] %s26
      %s28 = sshll.u32 [#allocation5], 4
      %s29 = int_to_ptr.vmem [resolvable:$true] %s28
      %34 = dma.hbm_to_vmem [thread:$0]  %s27, 256, %s29, [#allocation6], 64, 64, 4
    $region9: #{tpu_custom_call.1} parent=1 // pred_fallthru
      _
    // Predicated region
    $region10: #{tpu_custom_call.1} parent=1 // pred_check
      _
    $region11: #{tpu_custom_call.1} parent=1 // pred_check_branch
      %36 = sbr.rel (0) target = $region13
    $region12: #{tpu_custom_call.1} parent=1 // pred_region
      _
    $region13: #{tpu_custom_call.1} parent=1 // pred_fallthru
      _
    // Predicated region
    $region14: #{tpu_custom_call.1} parent=1 // pred_check
      _
    $region15: #{tpu_custom_call.1} parent=1 // pred_check_branch
      %38 = sbr.rel (0) target = $region17
    $region16: #{tpu_custom_call.1} parent=1 // pred_region
      %40 = dma.done [#allocation3], 64
    $region17: #{tpu_custom_call.1} parent=1 // pred_fallthru
      _
    // Predicated region
    $region18: #{tpu_custom_call.1} parent=1 // pred_check
      _
    $region19: #{tpu_custom_call.1} parent=1 // pred_check_branch
      %42 = sbr.rel (0) target = $region21
    $region20: #{tpu_custom_call.1} parent=1 // pred_region
      %44 = dma.done [#allocation6], 256
    $region21: #{tpu_custom_call.1} parent=1 // pred_fallthru
      _
    %v46 = vld [vmem:[#allocation2] sm:$0xf]
    %v47 = vld [vmem:[#allocation5] sm:$0xf]
    %v48 = vld [vmem:[#allocation5 + $0x4] sm:$0xf]
    %v49 = vld [vmem:[#allocation5 + $0x8] sm:$0xf]
    %v50 = vld [vmem:[#allocation5 + $0xc] sm:$0xf]
    %v51 = vld [vmem:[%s2] sm:$0x1]
    %v53 = vperm.slane %v51, 0
    %v59 = vunpack.c.l.b16 %v47
    %v60 = vunpack.c.l.b16 %v48
    %v61 = vunpack.c.l.b16 %v49
    %v62 = vunpack.c.l.b16 %v50
    %v63 = vpack.c.b16 %v60, %v59
    %v64 = vpack.c.b16 %v62, %v61
    %vm67 = vcmask 261120
    %v69 = vsel %vm67, %v46, 0
    %71 = vmatpush.bf16.msra.mxu0 0
    %72 = vmatpush.bf16.msra.mxu0 0
    %73 = vmatpush.bf16.msra.mxu0 0
    %74 = vmatpush.bf16.msra.mxu0 0
    %75 = vmatpush.bf16.msra.mxu0 0
    %76 = vmatpush.bf16.msra.mxu0 0
    %77 = vmatpush.bf16.msra.mxu0 %v64
    %78 = vmatpush.bf16.msra.mxu0 %v63
    %79 = vmatmul.bf16.gmra.mxu0 %v69
    %v80 = vpop.f32.mrf.mxu0
    %v81 = vadd.f32 %v53, %v80
    %v82 = vpop.f32.mrf.mxu0
    %83 = vdwg.mxu0
    %v84 = vsub.f32 0.0, %v81
    %v85 = vmul.f32 %v84, 1.442695
    %v86 = vpow.pop %v85
    %v87 = vadd.f32 %v86, 1.0
    %v88 = vrcp.pop %v87
    %v89 = vpack.c.bf16 %v88, %v88
    %90 = vst [vmem:[#allocation7] sm:$0xf] %v89
    // Predicated region
    $region22: #{tpu_custom_call.1} parent=1 // pred_check
      _
    $region23: #{tpu_custom_call.1} parent=1 // pred_check_branch
      %92 = sbr.rel (0) target = $region25
    $region24: #{tpu_custom_call.1} parent=1 // pred_region
      %94 = vsyncadd [#allocation4], 0
      %s96 = sshll.u32 [#allocation7], 4
      %s97 = int_to_ptr.vmem [resolvable:$true] %s96
      %s98 = sshll.u32 %s3, 4
      %s99 = int_to_ptr.hbm [resolvable:$true] %s98
      %101 = dma.vmem_to_hbm [thread:$0]  %s97, 64, %s99, [#allocation4]
    $region25: #{tpu_custom_call.1} parent=1 // pred_fallthru
      _
    // Predicated region
    $region26: #{tpu_custom_call.1} parent=1 // pred_check
      _
    $region27: #{tpu_custom_call.1} parent=1 // pred_check_branch
      %103 = sbr.rel (0) target = $region29
    $region28: #{tpu_custom_call.1} parent=1 // pred_region
      %105 = dma.done [#allocation4], 64
    $region29: #{tpu_custom_call.1} parent=1 // pred_fallthru
      _
    %106 = vsyncpa [#allocation3], 1
    %107 = vsyncpa [#allocation6], 1
    %108 = vsyncpa [#allocation4], 1

// kernel: tpu_custom_call.1
$region0: #{tpu_custom_call.1}
  #allocation0 [shape = 'u32[]', space=smem, size = 0x4, offset = 0x4, fixed_abs, tag = 'smem constant byte address 0x4 - core index']
  #allocation1 [shape = 'u32[72,128]{1,0:T(1,128)}', space=vmem, size = 0x9000, scoped, tag = 'internal scratch']
  %s0 = inlined_call_operand.hbm [shape: bf16[8,32], index: 0, kind: input, shape index: {}]
  %s1 = inlined_call_operand.hbm [shape: bf16[32,128], index: 1, kind: input, shape index: {}]
  %s2 = inlined_call_operand.vmem [shape: f32[1,128], index: 2, kind: input, shape index: {}]
  %s3 = inlined_call_operand.hbm [shape: bf16[8,128], index: 3, kind: output, shape index: {}]
  %s4 = sld [smem:[#allocation0]]
  $region30: #{tpu_custom_call.1} parent=0
    _
  %s6 = ssub.s32 1, %s4
  %s7 = scalar_select 0, %s6, %s4
  $region1: #{tpu_custom_call.1} parent=0
    #allocation2 [shape = 'u8[2048]{0}', space=vmem, size = 0x800, scoped, tag = 'input window, operand 0, single buffered']
    #allocation3 [shape = 's32[1]{0}', space=sflag, size = 0x4, scoped, tag = 'scoped memory for tpu_custom_call.1']
    #allocation4 [shape = 's32[1]{0}', space=sflag, size = 0x4, scoped, tag = 'scoped memory for tpu_custom_call.1']
    #allocation5 [shape = 'u8[8192]{0}', space=vmem, size = 0x2000, scoped, tag = 'input window, operand 1, single buffered']
    #allocation6 [shape = 's32[1]{0}', space=sflag, size = 0x4, scoped, tag = 'scoped memory for tpu_custom_call.1']
    #allocation7 [shape = 'u8[2048]{0}', space=vmem, size = 0x800, scoped, tag = 'output window, operand 0, single buffered']
    %8 = vsyncpa [#allocation3], 0
    %9 = vsyncpa [#allocation6], 0
    %10 = vsyncpa [#allocation4], 0
    // Predicated region
    $region2: #{tpu_custom_call.1} parent=1 // pred_check
      _
    $region3: #{tpu_custom_call.1} parent=1 // pred_check_branch
      %12 = sbr.rel (0) target = $region5
    $region4: #{tpu_custom_call.1} parent=1 // pred_region
      %14 = vsyncadd [#allocation3], 0
      %s16 = sshll.u32 %s0, 4
      %s17 = int_to_ptr.hbm [resolvable:$true] %s16
      %s18 = sshll.u32 [#allocation2], 4
      %s19 = int_to_ptr.vmem [resolvable:$true] %s18
      %21 = dma.hbm_to_vmem [thread:$0]  %s17, 64, %s19, [#allocation3]
    $region5: #{tpu_custom_call.1} parent=1 // pred_fallthru
      _
    // Predicated region
    $region6: #{tpu_custom_call.1} parent=1 // pred_check
      _
    $region7: #{tpu_custom_call.1} parent=1 // pred_check_branch
      %23 = sbr.rel (0) target = $region9
    $region8: #{tpu_custom_call.1} parent=1 // pred_region
      %25 = vsyncadd [#allocation6], 0
      %s26 = sshll.u32 %s1, 4
      %s27 = int_to_ptr.hbm [resolvable:$true] %s26
      %s28 = sshll.u32 [#allocation5], 4
      %s29 = int_to_ptr.vmem [resolvable:$true] %s28
      %34 = dma.hbm_to_vmem [thread:$0]  %s27, 256, %s29, [#allocation6], 64, 64, 4
    $region9: #{tpu_custom_call.1} parent=1 // pred_fallthru
      _
    // Predicated region
    $region10: #{tpu_custom_call.1} parent=1 // pred_check
      _
    $region11: #{tpu_custom_call.1} parent=1 // pred_check_branch
      %36 = sbr.rel (0) target = $region13
    $region12: #{tpu_custom_call.1} parent=1 // pred_region
      _
    $region13: #{tpu_custom_call.1} parent=1 // pred_fallthru
      _
    // Predicated region
    $region14: #{tpu_custom_call.1} parent=1 // pred_check
      _
    $region15: #{tpu_custom_call.1} parent=1 // pred_check_branch
      %38 = sbr.rel (0) target = $region17
    $region16: #{tpu_custom_call.1} parent=1 // pred_region
      %40 = dma.done [#allocation3], 64
    $region17: #{tpu_custom_call.1} parent=1 // pred_fallthru
      _
    // Predicated region
    $region18: #{tpu_custom_call.1} parent=1 // pred_check
      _
    $region19: #{tpu_custom_call.1} parent=1 // pred_check_branch
      %42 = sbr.rel (0) target = $region21
    $region20: #{tpu_custom_call.1} parent=1 // pred_region
      %44 = dma.done [#allocation6], 256
    $region21: #{tpu_custom_call.1} parent=1 // pred_fallthru
      _
    %v46 = vld [vmem:[#allocation2] sm:$0xf]
    %v47 = vld [vmem:[#allocation5] sm:$0xf]
    %v48 = vld [vmem:[#allocation5 + $0x4] sm:$0xf]
    %v49 = vld [vmem:[#allocation5 + $0x8] sm:$0xf]
    %v50 = vld [vmem:[#allocation5 + $0xc] sm:$0xf]
    %v51 = vld [vmem:[%s2] sm:$0x1]
    %v53 = vperm.slane %v51, 0
    %v59 = vunpack.c.l.b16 %v47
    %v60 = vunpack.c.l.b16 %v48
    %v61 = vunpack.c.l.b16 %v49
    %v62 = vunpack.c.l.b16 %v50
    %v63 = vpack.c.b16 %v60, %v59
    %v64 = vpack.c.b16 %v62, %v61
    %vm67 = vcmask 261120
    %v69 = vsel %vm67, %v46, 0
    %71 = vmatpush.bf16.msra.mxu0 0
    %72 = vmatpush.bf16.msra.mxu0 0
    %73 = vmatpush.bf16.msra.mxu0 0
    %74 = vmatpush.bf16.msra.mxu0 0
    %75 = vmatpush.bf16.msra.mxu0 0
    %76 = vmatpush.bf16.msra.mxu0 0
    %77 = vmatpush.bf16.msra.mxu0 %v64
    %78 = vmatpush.bf16.msra.mxu0 %v63
    %79 = vmatmul.bf16.gmra.mxu0 %v69
    %v80 = vpop.f32.mrf.mxu0
    %v81 = vadd.f32 %v53, %v80
    %v82 = vpop.f32.mrf.mxu0
    %83 = vdwg.mxu0
    %v84 = vsub.f32 0.0, %v81
    %v85 = vmul.f32 %v84, 1.442695
    %v86 = vpow.pop %v85
    %v87 = vadd.f32 %v86, 1.0
    %v88 = vrcp.pop %v87
    %v89 = vpack.c.bf16 %v88, %v88
    %90 = vst [vmem:[#allocation7] sm:$0xf] %v89
    // Predicated region
    $region22: #{tpu_custom_call.1} parent=1 // pred_check
      _
    $region23: #{tpu_custom_call.1} parent=1 // pred_check_branch
      %92 = sbr.rel (0) target = $region25
    $region24: #{tpu_custom_call.1} parent=1 // pred_region
      %94 = vsyncadd [#allocation4], 0
      %s96 = sshll.u32 [#allocation7], 4
      %s97 = int_to_ptr.vmem [resolvable:$true] %s96
      %s98 = sshll.u32 %s3, 4
      %s99 = int_to_ptr.hbm [resolvable:$true] %s98
      %101 = dma.vmem_to_hbm [thread:$0]  %s97, 64, %s99, [#allocation4]
    $region25: #{tpu_custom_call.1} parent=1 // pred_fallthru
      _
    // Predicated region
    $region26: #{tpu_custom_call.1} parent=1 // pred_check
      _
    $region27: #{tpu_custom_call.1} parent=1 // pred_check_branch
      %103 = sbr.rel (0) target = $region29
    $region28: #{tpu_custom_call.1} parent=1 // pred_region
      %105 = dma.done [#allocation4], 64
    $region29: #{tpu_custom_call.1} parent=1 // pred_fallthru
      _
    %106 = vsyncpa [#allocation3], 1
    %107 = vsyncpa [#allocation6], 1
    %108 = vsyncpa [#allocation4], 1

</llo_original>
